<compile_context>
chip_gen: v5e
topology: v5e:2x2
jax: 0.10.0
libtpu: 0.0.40
codegen_flags: <defaults>
</compile_context>

<pallas_src>
import jax
import jax.numpy as jnp
from jax.experimental import pallas as pl
from jax.experimental.pallas import tpu as pltpu


def _round_up(x: int, m: int) -> int:
    return (x + m - 1) // m * m


def _vocab_tiling(V: int, tn: int):
    n_v = pl.cdiv(V, tn)
    tn_eff = _round_up(pl.cdiv(V, n_v), 128)      # lane-aligned vocab tile
    return n_v, tn_eff, n_v * tn_eff


def _seq_tiling(S: int, ts: int, sub: int):
    n_s = pl.cdiv(S, ts)
    ts_eff = _round_up(pl.cdiv(S, n_s), sub)      # sublane-aligned seq tile
    return n_s, ts_eff, n_s * ts_eff


# ----------------------------------------------------------------------------
# Fused Pallas kernel.  Grid = (V_tiles, B, S_tiles), seq axis last ("arbitrary").
#   per grid point (j, b, s):
#     logits = hidden[b, s_tile, :] @ W[:, j_tile]           (MXU, f32 acc)
#     acc    = max(acc, max_s where(mask>0, logits, -inf))   (VPU + XLU collapse)
#   on the last seq tile:   values[b, j_tile] = log1p(relu(acc + bias[j_tile]))
# ----------------------------------------------------------------------------
def _fused_splade_kernel(h_ref, m_ref, w_ref, b_ref, o_ref, acc_ref):
    s_idx = pl.program_id(2)

    @pl.when(s_idx == 0)
    def _init():
        acc_ref[...] = jnp.full(acc_ref.shape, -jnp.inf, dtype=acc_ref.dtype)

    h = h_ref[0]                                                   # (TS, H)  bf16
    w = w_ref[...]                                                 # (H, TN)  bf16
    logits = jnp.dot(h, w, preferred_element_type=jnp.float32)     # (TS, TN) f32
    # exclude masked / padded rows from the running max (NOT by multiplying!)
    masked = jnp.where(m_ref[0] > 0.0, logits, -jnp.inf)           # (TS, TN)
    acc_ref[...] = jnp.maximum(acc_ref[...],
                               jnp.max(masked, axis=0, keepdims=True))

    @pl.when(s_idx == pl.num_programs(2) - 1)
    def _store():
        # bias + transcendental applied once per (vocab tile, batch), not per seq step
        vals = jnp.log1p(jnp.maximum(acc_ref[...] + b_ref[...], 0.0))
        o_ref[0, :, :] = vals.astype(o_ref.dtype)


def prepare_vocab_head(w_vocab, b_vocab, *, tn=2048, matmul_dtype=jnp.bfloat16):
    """Pre-cast + pre-pad the MLM head so forward() pays no per-call W round trip."""
    _, V = w_vocab.shape
    _, _, Vp = _vocab_tiling(V, tn)
    w = w_vocab.astype(matmul_dtype)
    b = b_vocab.astype(jnp.float32).reshape(1, V)
    if Vp != V:
        w = jnp.pad(w, ((0, 0), (0, Vp - V)))
        b = jnp.pad(b, ((0, 0), (0, Vp - V)))
    return w, b, V


def splade_sparse_scores(hidden, attention_mask, w_vocab, b_vocab, *,
                         vocab_size=None, tn=2048, ts=512,
                         matmul_dtype=jnp.bfloat16, out_dtype=jnp.float32):
    """values[b, v] = max_s log(1 + relu((hidden @ W + b)[b, s, v])) * mask[b, s].

    Fused vocab-projection + SPLADE sparse activation; logits never hit HBM.
    Accepts either raw (f32, unpadded) head params or params pre-prepared with
    `prepare_vocab_head` (in which case pass vocab_size for the true V).
    """
    B, S, H = hidden.shape
    assert w_vocab.shape[0] == H, (w_vocab.shape, H)
    V = int(vocab_size) if vocab_size is not None else int(w_vocab.shape[1])

    # --- tile sizes + padded extents ----------------------------------------
    n_v, tn_eff, Vp = _vocab_tiling(V, tn)
    pack = max(1, 4 // jnp.dtype(matmul_dtype).itemsize)   # 16 rows for bf16, 8 for f32
    sub = 8 * pack
    n_s, ts_eff, Sp = _seq_tiling(S, ts, sub)

    # --- operands (skip cast/pad when the caller pre-prepared them) ----------
    h = hidden if hidden.dtype == matmul_dtype else hidden.astype(matmul_dtype)
    if w_vocab.dtype == matmul_dtype and w_vocab.shape[1] == Vp:
        w = w_vocab
    else:
        w = w_vocab.astype(matmul_dtype)[:, :V]
        if Vp != V:
            w = jnp.pad(w, ((0, 0), (0, Vp - V)))
    if (b_vocab.ndim == 2 and b_vocab.shape == (1, Vp)
            and b_vocab.dtype == jnp.float32):
        b = b_vocab
    else:
        b = b_vocab.astype(jnp.float32).reshape(1, -1)[:, :V]
        if Vp != V:
            b = jnp.pad(b, ((0, 0), (0, Vp - V)))
    m = attention_mask.astype(jnp.float32).reshape(B, S, 1)
    if Sp != S:   # padded seq rows have mask = 0 -> excluded from the max
        h = jnp.pad(h, ((0, 0), (0, Sp - S), (0, 0)))
        m = jnp.pad(m, ((0, 0), (0, Sp - S), (0, 0)))

    # --- VMEM budget: actual double-buffered tile bytes + headroom, <=40 MiB --
    in_bytes = jnp.dtype(matmul_dtype).itemsize
    est = (2 * ts_eff * max(H, 128) * in_bytes    # hidden tile (x2 buffers)
           + 2 * H * tn_eff * in_bytes            # weight tile
           + 2 * ts_eff * 128 * 4                 # mask tile (lane-padded)
           + 2 * 8 * tn_eff * 4                   # bias tile (sublane-padded)
           + 2 * 8 * tn_eff * 4                   # output tile
           + 8 * tn_eff * 4)                      # accumulator scratch
    vmem_limit = int(min(max(2 * est, 24 * 2**20), 40 * 2**20))

    values3 = pl.pallas_call(
        _fused_splade_kernel,
        out_shape=jax.ShapeDtypeStruct((B, 1, Vp), out_dtype),
        # vocab-tile axis outermost: W tile is DMA'd once, not once per batch
        grid=(Vp // tn_eff, B, Sp // ts_eff),
        in_specs=[
            pl.BlockSpec((1, ts_eff, H), lambda j, bb, s: (bb, s, 0)),
            pl.BlockSpec((1, ts_eff, 1), lambda j, bb, s: (bb, s, 0)),
            pl.BlockSpec((H, tn_eff), lambda j, bb, s: (0, j)),
            pl.BlockSpec((1, tn_eff), lambda j, bb, s: (0, j)),
        ],
        out_specs=pl.BlockSpec((1, 1, tn_eff), lambda j, bb, s: (bb, 0, j)),
        scratch_shapes=[pltpu.VMEM((1, tn_eff), jnp.float32)],
        compiler_params=pltpu.CompilerParams(
            dimension_semantics=("parallel", "parallel", "arbitrary"),
            vmem_limit_bytes=vmem_limit,
        ),
    )(h, m, w, b)
    # TODO(synk): the Triton kernel also stashes argmax-over-s indices on the
    # function object; forward() never returns them, so they are not computed here.
    return values3[:, 0, :V]


# ----------------------------------------------------------------------------
# Synthetic "transformer_model" backbone (embed -> tanh MLP) as plain JAX glue.
# The MLM vocab projection itself lives inside the fused Pallas kernel above.
# ----------------------------------------------------------------------------
def init_transformer_params(key, vocab_size, hidden):
    k1, k2, k3 = jax.random.split(key, 3)
    return {
        "emb": 0.5 * jax.random.normal(k1, (vocab_size, hidden), jnp.float32),
        "w1": 0.5 * jax.random.normal(k2, (hidden, hidden), jnp.float32),
        "b1": jnp.zeros((hidden,), jnp.float32),
        "w_vocab": 0.5 * jax.random.normal(k3, (hidden, vocab_size), jnp.float32),
        "b_vocab": jnp.zeros((vocab_size,), jnp.float32),
    }


def encoder_forward(params, input_ids, out_dtype=jnp.bfloat16):
    emb = params["emb"][input_ids]                                    # (B, S, H)
    return jnp.tanh(emb @ params["w1"] + params["b1"]).astype(out_dtype)


class MemoryEfficientSpladeNoTopK:
    """JAX/Pallas port of MemoryEfficientSplade_noTopK (fused, logits never in HBM)."""

    def __init__(self, params, *, tn=2048, ts=512, matmul_dtype=jnp.bfloat16):
        self.params = params
        self.tn, self.ts, self.matmul_dtype = tn, ts, matmul_dtype
        # head pre-cast to bf16 and pre-padded once -> no per-forward W cast/pad
        self.w_head, self.b_head, self.vocab_size = prepare_vocab_head(
            params["w_vocab"], params["b_vocab"], tn=tn, matmul_dtype=matmul_dtype)

    def forward(self, input_ids, attention_mask):
        hidden = encoder_forward(self.params, input_ids, out_dtype=self.matmul_dtype)
        return splade_sparse_scores(
            hidden, attention_mask, self.w_head, self.b_head,
            vocab_size=self.vocab_size, tn=self.tn, ts=self.ts,
            matmul_dtype=self.matmul_dtype)


# ----------------------------------------------------------------------------
# Pure-JAX reference (same bf16 matmul precision) for sanity checking.
# ----------------------------------------------------------------------------
def splade_ref(hidden, attention_mask, w_vocab, b_vocab, matmul_dtype=jnp.bfloat16):
    logits = jnp.dot(hidden.astype(matmul_dtype), w_vocab.astype(matmul_dtype),
                     preferred_element_type=jnp.float32) + b_vocab.astype(jnp.float32)
    act = jnp.log1p(jnp.maximum(logits, 0.0)) * attention_mask.astype(
        jnp.float32)[:, :, None]
    return jnp.max(act, axis=1)


if __name__ == "__main__":
    # Small shapes; V deliberately NOT a multiple of 128 to exercise vocab padding,
    # and one batch row has trailing padding to exercise the masking path.
    B, S, H, V = 2, 8, 32, 500
    key = jax.random.PRNGKey(0)
    kp, ki = jax.random.split(key)

    params = init_transformer_params(kp, V, H)
    input_ids = jax.random.randint(ki, (B, S), 0, V, dtype=jnp.int32)
    attention_mask = jnp.array(
        [[1, 1, 1, 1, 1, 1, 1, 1], [1, 1, 1, 1, 1, 0, 0, 0]], dtype=jnp.int32
    )

    model = MemoryEfficientSpladeNoTopK(params)
    values = jax.block_until_ready(model.forward(input_ids, attention_mask))

    hidden_f32 = jnp.tanh(params["emb"][input_ids] @ params["w1"] + params["b1"])
    expected = splade_ref(hidden_f32, attention_mask,
                          params["w_vocab"], params["b_vocab"])
    assert values.shape == (B, V), values.shape
    err = float(jnp.max(jnp.abs(values - expected)))
    assert jnp.allclose(values, expected, atol=1e-3, rtol=1e-3), \
        f"mismatch, max err {err}"

    print("KERNEL_OK")
</pallas_src>

<mosaic_0001>
module attributes {stable_mosaic.version = 11 : i64} {
  func.func @_fused_splade_kernel(%arg0: i32, %arg1: i32, %arg2: i32, %arg3: memref<1x16x32xbf16, #tpu.memory_space<vmem>>, %arg4: memref<1x16x1xf32, #tpu.memory_space<vmem>>, %arg5: memref<32x512xbf16, #tpu.memory_space<vmem>>, %arg6: memref<1x512xf32, #tpu.memory_space<vmem>>, %arg7: memref<1x1x512xf32, #tpu.memory_space<vmem>>, %arg8: memref<1x512xf32, #tpu.memory_space<vmem>>) attributes {dimension_semantics = [#tpu.dimension_semantics<parallel>, #tpu.dimension_semantics<parallel>, #tpu.dimension_semantics<arbitrary>], iteration_bounds = array<i64: 1, 2, 1>, scalar_prefetch = 0 : i64, scratch_operands = 1 : i64, tpu.core_type = #tpu.core_type<tc>, window_params = [{transform_indices = @transform_0, window_bounds = array<i64: 1, 16, 32>}, {transform_indices = @transform_1, window_bounds = array<i64: 1, 16, 1>}, {transform_indices = @transform_2, window_bounds = array<i64: 32, 512>}, {transform_indices = @transform_3, window_bounds = array<i64: 1, 512>}, {transform_indices = @transform_4, window_bounds = array<i64: 1, 1, 512>}]} {
    %c0_i32 = arith.constant 0 : i32
    %0 = arith.cmpi eq, %arg2, %c0_i32 : i32
    %1 = arith.extui %0 : i1 to i32
    %c0_i32_0 = arith.constant 0 : i32
    %2 = arith.cmpi ne, %1, %c0_i32_0 : i32
    scf.if %2 {
      %cst_17 = arith.constant 0xFF800000 : f32
      %23 = vector.broadcast %cst_17 : f32 to vector<1x512xf32>
      %c0_18 = arith.constant 0 : index
      %c0_19 = arith.constant 0 : index
      %24 = vector.load %arg8[%c0_18, %c0_19] : memref<1x512xf32, #tpu.memory_space<vmem>>, vector<1x512xf32>
      tpu.vector_store %arg8[%c0_18, %c0_19], %23 {strides = array<i32>} : memref<1x512xf32, #tpu.memory_space<vmem>>, vector<1x512xf32>,
    } else {
    }
    %c0 = arith.constant 0 : index
    %c0_1 = arith.constant 0 : index
    %c0_2 = arith.constant 0 : index
    %3 = vector.load %arg3[%c0, %c0_1, %c0_2] : memref<1x16x32xbf16, #tpu.memory_space<vmem>>, vector<1x16x32xbf16>
    %4 = vector.shape_cast %3 : vector<1x16x32xbf16> to vector<16x32xbf16>
    %c0_3 = arith.constant 0 : index
    %c0_4 = arith.constant 0 : index
    %5 = vector.load %arg5[%c0_3, %c0_4] : memref<32x512xbf16, #tpu.memory_space<vmem>>, vector<32x512xbf16>
    %cst = arith.constant dense<0.000000e+00> : vector<16x512xf32>
    %6 = tpu.matmul %4, %5, %cst {dimension_numbers = #tpu.dot_dimension_numbers<[1], [0], [0], [1], [0, 0, 1, 1], [], []>} : vector<16x32xbf16>, vector<32x512xbf16>, vector<16x512xf32> -> vector<16x512xf32>
    %c0_5 = arith.constant 0 : index
    %c0_6 = arith.constant 0 : index
    %c0_7 = arith.constant 0 : index
    %7 = vector.load %arg4[%c0_5, %c0_6, %c0_7] : memref<1x16x1xf32, #tpu.memory_space<vmem>>, vector<1x16x1xf32>
    %8 = vector.shape_cast %7 : vector<1x16x1xf32> to vector<16x1xf32>
    %cst_8 = arith.constant 0.000000e+00 : f32
    %9 = vector.broadcast %cst_8 : f32 to vector<16x1xf32>
    %10 = arith.cmpf ogt, %8, %9 : vector<16x1xf32>
    %cst_9 = arith.constant 0xFF800000 : f32
    %11 = vector.shape_cast %10 : vector<16x1xi1> to vector<16x1xi1>
    %12 = vector.broadcast %11 : vector<16x1xi1> to vector<16x512xi1>
    %13 = vector.broadcast %cst_9 : f32 to vector<16x512xf32>
    %14 = arith.select %12, %6, %13 : vector<16x512xi1>, vector<16x512xf32>
    %c0_10 = arith.constant 0 : index
    %c0_11 = arith.constant 0 : index
    %15 = vector.load %arg8[%c0_10, %c0_11] : memref<1x512xf32, #tpu.memory_space<vmem>>, vector<1x512xf32>
    %cst_12 = arith.constant dense<0xFF800000> : vector<512xf32>
    %16 = vector.multi_reduction <maximumf>, %14, %cst_12 [0] : vector<16x512xf32> to vector<512xf32>
    %17 = vector.shape_cast %16 : vector<512xf32> to vector<1x512xf32>
    %18 = arith.maximumf %15, %17 : vector<1x512xf32>
    %c0_13 = arith.constant 0 : index
    %c0_14 = arith.constant 0 : index
    %19 = vector.load %arg8[%c0_13, %c0_14] : memref<1x512xf32, #tpu.memory_space<vmem>>, vector<1x512xf32>
    tpu.vector_store %arg8[%c0_13, %c0_14], %18 {strides = array<i32>} : memref<1x512xf32, #tpu.memory_space<vmem>>, vector<1x512xf32>,
    %c0_i32_15 = arith.constant 0 : i32
    %20 = arith.cmpi eq, %arg2, %c0_i32_15 : i32
    %21 = arith.extui %20 : i1 to i32
    %c0_i32_16 = arith.constant 0 : i32
    %22 = arith.cmpi ne, %21, %c0_i32_16 : i32
    scf.if %22 {
      %c0_17 = arith.constant 0 : index
      %c0_18 = arith.constant 0 : index
      %23 = vector.load %arg8[%c0_17, %c0_18] : memref<1x512xf32, #tpu.memory_space<vmem>>, vector<1x512xf32>
      %c0_19 = arith.constant 0 : index
      %c0_20 = arith.constant 0 : index
      %24 = vector.load %arg6[%c0_19, %c0_20] : memref<1x512xf32, #tpu.memory_space<vmem>>, vector<1x512xf32>
      %25 = arith.addf %23, %24 : vector<1x512xf32>
      %cst_21 = arith.constant 0.000000e+00 : f32
      %26 = vector.broadcast %cst_21 : f32 to vector<1x512xf32>
      %27 = arith.maximumf %25, %26 : vector<1x512xf32>
      %28 = math.log1p %27 : vector<1x512xf32>
      %c0_22 = arith.constant 0 : index
      %c0_23 = arith.constant 0 : index
      %c0_24 = arith.constant 0 : index
      %29 = vector.load %arg7[%c0_22, %c0_23, %c0_24] : memref<1x1x512xf32, #tpu.memory_space<vmem>>, vector<1x1x512xf32>
      %30 = vector.shape_cast %29 : vector<1x1x512xf32> to vector<1x512xf32>
      %31 = vector.shape_cast %28 : vector<1x512xf32> to vector<1x1x512xf32>
      tpu.vector_store %arg7[%c0_22, %c0_23, %c0_24], %31 {strides = array<i32>} : memref<1x1x512xf32, #tpu.memory_space<vmem>>, vector<1x1x512xf32>,
    } else {
    }
    return
  }
  func.func @transform_0(%arg0: i32, %arg1: i32, %arg2: i32) -> (i32, i32, i32) {
    %c0_i32 = arith.constant 0 : i32
    %c0_i32_0 = arith.constant 0 : i32
    return %arg1, %arg2, %c0_i32 : i32, i32, i32
  }
  func.func @transform_1(%arg0: i32, %arg1: i32, %arg2: i32) -> (i32, i32, i32) {
    %c0_i32 = arith.constant 0 : i32
    %c0_i32_0 = arith.constant 0 : i32
    return %arg1, %arg2, %c0_i32 : i32, i32, i32
  }
  func.func @transform_2(%arg0: i32, %arg1: i32, %arg2: i32) -> (i32, i32) {
    %c0_i32 = arith.constant 0 : i32
    %c0_i32_0 = arith.constant 0 : i32
    return %c0_i32, %arg0 : i32, i32
  }
  func.func @transform_3(%arg0: i32, %arg1: i32, %arg2: i32) -> (i32, i32) {
    %c0_i32 = arith.constant 0 : i32
    %c0_i32_0 = arith.constant 0 : i32
    return %c0_i32, %arg0 : i32, i32
  }
  func.func @transform_4(%arg0: i32, %arg1: i32, %arg2: i32) -> (i32, i32, i32) {
    %c0_i32 = arith.constant 0 : i32
    %c0_i32_0 = arith.constant 0 : i32
    return %arg1, %c0_i32, %arg0 : i32, i32, i32
  }
}

</mosaic_0001>

<llo_original>
// kernel: tpu_custom_call.1
$region0: #{tpu_custom_call.1}
  #allocation0 [shape = 'u32[]', space=smem, size = 0x4, offset = 0x4, fixed_abs, tag = 'smem constant byte address 0x4 - core index']
  #allocation1 [shape = 'u32[72,128]{1,0:T(1,128)}', space=vmem, size = 0x9000, scoped, tag = 'internal scratch']
  #allocation2 [shape = 'f32[1,512]{1,0:T(1,128)}', space=vmem, size = 0x800, scoped, tag = 'scratch operand']
  %s0 = inlined_call_operand.vmem [shape: bf16[2,16,32], index: 0, kind: input, shape index: {}]
  %s1 = inlined_call_operand.vmem [shape: f32[2,16,1], index: 1, kind: input, shape index: {}]
  %s2 = inlined_call_operand.hbm [shape: bf16[32,512], index: 2, kind: input, shape index: {}]
  %s3 = inlined_call_operand.vmem [shape: f32[1,512], index: 3, kind: input, shape index: {}]
  %s4 = inlined_call_operand.hbm [shape: f32[2,1,512], index: 4, kind: output, shape index: {}]
  %s5 = sld [smem:[#allocation0]]
  $region61: #{tpu_custom_call.1} parent=0
    _
  %s7 = ssub.s32 1, %s5
  %s8 = scalar_select 0, %s7, %s5
  $region1: #{tpu_custom_call.1} parent=0
    #allocation3 [shape = 'u8[32768]{0}', space=vmem, size = 0x8000, scoped, tag = 'input window, operand 2, single buffered']
    #allocation4 [shape = 's32[2]{0}', space=sflag, size = 0x8, scoped, tag = 'scoped memory for tpu_custom_call.1']
    #allocation5 [shape = 's32[2]{0}', space=sflag, size = 0x8, scoped, tag = 'scoped memory for tpu_custom_call.1']
    #allocation6 [shape = 'u8[4096]{0}', space=vmem, size = 0x1000, scoped, tag = 'output window, operand 0']
    %9 = vsyncpa [#allocation4], 0
    %10 = vsyncpa [#allocation5], 0
    %s11 = scalar_lea.sflag [#allocation5], 1
    %12 = vsyncpa %s11, 0
    loop: start=0, step=1, limit=4
    $region2: #{tpu_custom_call.1} parent=1 // loop_pre_header
      _
    $region3: #{tpu_custom_call.1} parent=1 // loop_header
      %s14 = sphi 0, %s18
      %p15 = scmp.ge.s32.totalorder %s14, 4
      %s21 = sphi 0, %s40
      %s22 = sphi 0, %s36
      %s23 = sphi 0, %s32
      %s24 = sphi 0, %s21
      %s25 = sphi 0, %s22
      %s26 = sphi 0, %s23
      %s27 = sphi 0, %s24
      %s28 = sphi 0, %s25
      %s29 = sphi 0, %s26
      %s45 = sphi 0, %s47
      %s48 = sphi 0, %s45
      %s49 = sphi 0, %s48
      %s65 = sphi 0, %s49
      %s73 = sphi 0, %s75
      %s76 = sphi 0, %s73
      %s77 = sphi 0, %s76
      %s93 = sphi 0, %s77
      %s99 = sphi 0, %s101
      %s102 = sphi 0, %s99
      %s103 = sphi 0, %s102
      %s119 = sphi 0, %s103
      %s125 = sphi 0, %s127
      %s128 = sphi 0, %s125
      %s129 = sphi 0, %s128
      %s145 = sphi 0, %s129
      %s153 = sphi 0, %s155
      %s156 = sphi 0, %s153
      %s157 = sphi 0, %s156
      %s173 = sphi 0, %s157
    $region4: #{tpu_custom_call.1} parent=1 // loop_header_branch
      %17 = sbr.rel (%p15) target = $region8
    $region5: #{tpu_custom_call.1} parent=1 // loop_body
      %s19 = ssub.s32 %s14, 1
      %s20 = ssub.s32 %s14, 2
      %s30 = sadd.s32 1, %s23
      %p31 = scmp.ge.s32.totalorder %s30, 1
      %s32 = scalar_select %p31, 0, %s30
      %s33 = sadd.s32 1, %s22
      %s34 = scalar_select %p31, %s33, %s22
      %p35 = scmp.ge.s32.totalorder %s34, 2
      %s36 = scalar_select %p35, 0, %s34
      %s37 = sadd.s32 1, %s21
      %s38 = scalar_select %p35, %s37, %s21
      %p39 = scmp.ge.s32.totalorder %s38, 1
      %s40 = scalar_select %p39, 0, %s38
      %s41 = ssub.s32 %s22, %s36
      %s42 = ssub.s32 %s23, %s32
      %s43 = sor.u32 %s41, %s42
      %p44 = scmp.eq.s32.totalorder %s43, 0
      %s46 = sadd.s32 %s45, 1
      %s47 = scalar_select %p44, %s45, %s46
      %p50 = pneg %p44
      %p51 = scmp.eq.s32.totalorder %s14, 1
      %p52 = por %p50, %p51
      %p53 = scmp.ne.s32.totalorder %s45, %s48
      %p54 = scmp.eq.s32.totalorder %s14, 0
      %p55 = por %p53, %p54
      %p56 = scmp.ne.s32.totalorder %s45, %s48
      %p57 = scmp.eq.s32.totalorder %s19, 1
      %p58 = por %p56, %p57
      %p59 = scmp.ne.s32.totalorder %s48, %s49
      %p60 = scmp.eq.s32.totalorder %s19, 0
      %p61 = por %p59, %p60
      %p62 = scmp.ne.s32.totalorder %s48, %s49
      %p63 = scmp.eq.s32.totalorder %s20, 1
      %p64 = por %p62, %p63
      %p66 = scmp.ne.s32.totalorder %s49, %s65
      %p67 = scmp.eq.s32.totalorder %s20, 0
      %p68 = por %p66, %p67
      %s69 = ssub.s32 %s22, %s36
      %s70 = ssub.s32 %s23, %s32
      %s71 = sor.u32 %s69, %s70
      %p72 = scmp.eq.s32.totalorder %s71, 0
      %s74 = sadd.s32 %s73, 1
      %s75 = scalar_select %p72, %s73, %s74
      %p78 = pneg %p72
      %p79 = scmp.eq.s32.totalorder %s14, 1
      %p80 = por %p78, %p79
      %p81 = scmp.ne.s32.totalorder %s73, %s76
      %p82 = scmp.eq.s32.totalorder %s14, 0
      %p83 = por %p81, %p82
      %p84 = scmp.ne.s32.totalorder %s73, %s76
      %p85 = scmp.eq.s32.totalorder %s19, 1
      %p86 = por %p84, %p85
      %p87 = scmp.ne.s32.totalorder %s76, %s77
      %p88 = scmp.eq.s32.totalorder %s19, 0
      %p89 = por %p87, %p88
      %p90 = scmp.ne.s32.totalorder %s76, %s77
      %p91 = scmp.eq.s32.totalorder %s20, 1
      %p92 = por %p90, %p91
      %p94 = scmp.ne.s32.totalorder %s77, %s93
      %p95 = scmp.eq.s32.totalorder %s20, 0
      %p96 = por %p94, %p95
      %s97 = ssub.s32 %s21, %s40
      %p98 = scmp.eq.s32.totalorder %s97, 0
      %s100 = sadd.s32 %s99, 1
      %s101 = scalar_select %p98, %s99, %s100
      %p104 = pneg %p98
      %p105 = scmp.eq.s32.totalorder %s14, 1
      %p106 = por %p104, %p105
      %p107 = scmp.ne.s32.totalorder %s99, %s102
      %p108 = scmp.eq.s32.totalorder %s14, 0
      %p109 = por %p107, %p108
      %p110 = scmp.ne.s32.totalorder %s99, %s102
      %p111 = scmp.eq.s32.totalorder %s19, 1
      %p112 = por %p110, %p111
      %p113 = scmp.ne.s32.totalorder %s102, %s103
      %p114 = scmp.eq.s32.totalorder %s19, 0
      %p115 = por %p113, %p114
      %p116 = scmp.ne.s32.totalorder %s102, %s103
      %p117 = scmp.eq.s32.totalorder %s20, 1
      %p118 = por %p116, %p117
      %p120 = scmp.ne.s32.totalorder %s103, %s119
      %p121 = scmp.eq.s32.totalorder %s20, 0
      %p122 = por %p120, %p121
      %s123 = ssub.s32 %s21, %s40
      %p124 = scmp.eq.s32.totalorder %s123, 0
      %s126 = sadd.s32 %s125, 1
      %s127 = scalar_select %p124, %s125, %s126
      %p130 = pneg %p124
      %p131 = scmp.eq.s32.totalorder %s14, 1
      %p132 = por %p130, %p131
      %p133 = scmp.ne.s32.totalorder %s125, %s128
      %p134 = scmp.eq.s32.totalorder %s14, 0
      %p135 = por %p133, %p134
      %p136 = scmp.ne.s32.totalorder %s125, %s128
      %p137 = scmp.eq.s32.totalorder %s19, 1
      %p138 = por %p136, %p137
      %p139 = scmp.ne.s32.totalorder %s128, %s129
      %p140 = scmp.eq.s32.totalorder %s19, 0
      %p141 = por %p139, %p140
      %p142 = scmp.ne.s32.totalorder %s128, %s129
      %p143 = scmp.eq.s32.totalorder %s20, 1
      %p144 = por %p142, %p143
      %p146 = scmp.ne.s32.totalorder %s129, %s145
      %p147 = scmp.eq.s32.totalorder %s20, 0
      %p148 = por %p146, %p147
      %s149 = ssub.s32 %s22, %s36
      %s150 = ssub.s32 %s21, %s40
      %s151 = sor.u32 %s149, %s150
      %p152 = scmp.eq.s32.totalorder %s151, 0
      %s154 = sadd.s32 %s153, 1
      %s155 = scalar_select %p152, %s153, %s154
      %p158 = pneg %p152
      %p159 = scmp.eq.s32.totalorder %s14, 1
      %p160 = por %p158, %p159
      %p161 = scmp.ne.s32.totalorder %s153, %s156
      %p162 = scmp.eq.s32.totalorder %s14, 0
      %p163 = por %p161, %p162
      %p164 = scmp.ne.s32.totalorder %s153, %s156
      %p165 = scmp.eq.s32.totalorder %s19, 1
      %p166 = por %p164, %p165
      %p167 = scmp.ne.s32.totalorder %s156, %s157
      %p168 = scmp.eq.s32.totalorder %s19, 0
      %p169 = por %p167, %p168
      %p170 = scmp.ne.s32.totalorder %s156, %s157
      %p171 = scmp.eq.s32.totalorder %s20, 1
      %p172 = por %p170, %p171
      %p174 = scmp.ne.s32.totalorder %s157, %s173
      %p175 = scmp.eq.s32.totalorder %s20, 0
      %p176 = por %p174, %p175
      %p177 = scmp.le.s32.totalorder 1, %s14
      %p178 = scmp.lt.s32.totalorder %s14, 3
      %p179 = pnand %p177, %p178
      %p180 = pneg %p179
      // Predicated region
      $region9: #{tpu_custom_call.1} parent=5 // pred_check
        _
      $region10: #{tpu_custom_call.1} parent=5 // pred_check_branch
        %182 = sbr.rel (%p179) target = $region12
      $region11: #{tpu_custom_call.1} parent=5 // pred_region
        %s183 = ssub.s32 %s14, 1
        // Predicated region
        $region13: #{tpu_custom_call.1} parent=11 // pred_check
          %p184 = pneg %p115
        $region14: #{tpu_custom_call.1} parent=11 // pred_check_branch
          %186 = sbr.rel (%p184) target = $region16
        $region15: #{tpu_custom_call.1} parent=11 // pred_region
          %s187 = smul.u32 4, %s24
          %189 = vsyncadd [#allocation4], 0
          %s190 = smul.addr %s187, 4
          %s191 = scalar_lea.hbm %s2, %s190
          %s192 = sshll.u32 %s191, 4
          %s193 = int_to_ptr.hbm [resolvable:$true] %s192
          %s194 = sshll.u32 [#allocation3], 4
          %s195 = int_to_ptr.vmem [resolvable:$true] %s194
          %200 = dma.hbm_to_vmem [thread:$0]  %s193, 1024, %s195, [#allocation4], 256, 256, 16
        $region16: #{tpu_custom_call.1} parent=11 // pred_fallthru
          _
        // Predicated region
        $region17: #{tpu_custom_call.1} parent=11 // pred_check
          %p201 = pneg %p141
        $region18: #{tpu_custom_call.1} parent=11 // pred_check_branch
          %203 = sbr.rel (%p201) target = $region20
        $region19: #{tpu_custom_call.1} parent=11 // pred_region
          %s204 = smul.u32 4, %s24
          %p205 = scmp.lt.s32.totalorder %s204, 3
          %s206 = scalar_select %p205, %s204, 3
          %s207 = scalar_lea.vmem %s3, %s206
          %s208 = smul.u32 4, %s24
        $region20: #{tpu_custom_call.1} parent=11 // pred_fallthru
          _
      $region12: #{tpu_custom_call.1} parent=5 // pred_fallthru
        _
      %p209 = scmp.lt.s32.totalorder %s14, 2
      // Predicated region
      $region21: #{tpu_custom_call.1} parent=5 // pred_check
        %p210 = pneg %p209
      $region22: #{tpu_custom_call.1} parent=5 // pred_check_branch
        %212 = sbr.rel (%p210) target = $region24
      $region23: #{tpu_custom_call.1} parent=5 // pred_region
        // Predicated region
        $region25: #{tpu_custom_call.1} parent=23 // pred_check
          %p213 = pneg %p55
        $region26: #{tpu_custom_call.1} parent=23 // pred_check_branch
          %215 = sbr.rel (%p213) target = $region28
        $region27: #{tpu_custom_call.1} parent=23 // pred_region
          %s216 = smul.u32 2, %s23
          %p217 = scmp.lt.s32.totalorder %s22, 1
          %s218 = scalar_select %p217, %s22, 1
          %p219 = scmp.lt.s32.totalorder %s216, 1
          %s220 = scalar_select %p219, %s216, 1
          %s221 = smul.addr %s218, 2
          %s222 = sadd.s32 %s220, %s221
          %s223 = smul.addr %s222, 4
          %s224 = scalar_lea.vmem %s0, %s223
          %s225 = smul.u32 2, %s23
        $region28: #{tpu_custom_call.1} parent=23 // pred_fallthru
          _
        // Predicated region
        $region29: #{tpu_custom_call.1} parent=23 // pred_check
          %p226 = pneg %p83
        $region30: #{tpu_custom_call.1} parent=23 // pred_check_branch
          %228 = sbr.rel (%p226) target = $region32
        $region31: #{tpu_custom_call.1} parent=23 // pred_region
          %s229 = smul.u32 2, %s23
          %p230 = scmp.lt.s32.totalorder %s22, 1
          %s231 = scalar_select %p230, %s22, 1
          %p232 = scmp.lt.s32.totalorder %s229, 1
          %s233 = scalar_select %p232, %s229, 1
          %s234 = smul.addr %s231, 2
          %s235 = sadd.s32 %s233, %s234
          %s236 = smul.addr %s235, 8
          %s237 = scalar_lea.vmem %s1, %s236
          %s238 = smul.u32 2, %s23
        $region32: #{tpu_custom_call.1} parent=23 // pred_fallthru
          _
      $region24: #{tpu_custom_call.1} parent=5 // pred_fallthru
        _
      %p239 = scmp.le.s32.totalorder 1, %s14
      %p240 = scmp.lt.s32.totalorder %s14, 3
      %p241 = pnand %p239, %p240
      %p242 = pneg %p241
      // Predicated region
      $region33: #{tpu_custom_call.1} parent=5 // pred_check
        _
      $region34: #{tpu_custom_call.1} parent=5 // pred_check_branch
        %244 = sbr.rel (%p241) target = $region36
      $region35: #{tpu_custom_call.1} parent=5 // pred_region
        %s245 = ssub.s32 %s14, 1
        // Predicated region
        $region37: #{tpu_custom_call.1} parent=35 // pred_check
          %p246 = pneg %p115
        $region38: #{tpu_custom_call.1} parent=35 // pred_check_branch
          %248 = sbr.rel (%p246) target = $region40
        $region39: #{tpu_custom_call.1} parent=35 // pred_region
          %250 = dma.done [#allocation4], 1024
        $region40: #{tpu_custom_call.1} parent=35 // pred_fallthru
          _
        %s251 = smul.u32 2, %s26
        %p252 = scmp.lt.s32.totalorder %s25, 1
        %s253 = scalar_select %p252, %s25, 1
        %p254 = scmp.lt.s32.totalorder %s251, 1
        %s255 = scalar_select %p254, %s251, 1
        %s256 = smul.addr %s253, 2
        %s257 = sadd.s32 %s255, %s256
        %s258 = smul.addr %s257, 4
        %s259 = scalar_lea.vmem %s0, %s258
        %p260 = pneg %p61
        %p261 = pneg %p58
        %s262 = smul.u32 2, %s26
        %p263 = scmp.lt.s32.totalorder %s25, 1
        %s264 = scalar_select %p263, %s25, 1
        %p265 = scmp.lt.s32.totalorder %s262, 1
        %s266 = scalar_select %p265, %s262, 1
        %s267 = smul.addr %s264, 2
        %s268 = sadd.s32 %s266, %s267
        %s269 = smul.addr %s268, 8
        %s270 = scalar_lea.vmem %s1, %s269
        %p271 = pneg %p89
        %p272 = pneg %p86
        %p273 = pneg %p115
        %p274 = pneg %p112
        %s275 = smul.u32 4, %s24
        %p276 = scmp.lt.s32.totalorder %s275, 3
        %s277 = scalar_select %p276, %s275, 3
        %s278 = scalar_lea.vmem %s3, %s277
        %p279 = pneg %p141
        %p280 = pneg %p138
        %p281 = pneg %p169
        %p282 = pneg %p166
        %s283 = sand.u32 %s156, 1
        %s284 = scalar_lea.sflag [#allocation5], %s283
        %s285 = sand.u32 %s156, 1
        %s286 = smul.addr %s285, 4
        %s287 = scalar_lea.vmem [#allocation6], %s286
        %s288 = smul.u32 2, %s26
        %p289 = scmp.lt.s32.totalorder %s25, 1
        %s290 = scalar_select %p289, %s25, 1
        %p291 = scmp.lt.s32.totalorder %s288, 1
        %s292 = scalar_select %p291, %s288, 1
        %s293 = smul.addr %s290, 2
        %s294 = sadd.s32 %s292, %s293
        %s295 = smul.addr %s294, 4
        %s296 = scalar_lea.vmem %s0, %s295
        %s297 = smul.u32 2, %s26
        %s298 = smul.u32 2, %s26
        %p299 = scmp.lt.s32.totalorder %s25, 1
        %s300 = scalar_select %p299, %s25, 1
        %p301 = scmp.lt.s32.totalorder %s298, 1
        %s302 = scalar_select %p301, %s298, 1
        %s303 = smul.addr %s300, 2
        %s304 = sadd.s32 %s302, %s303
        %s305 = smul.addr %s304, 8
        %s306 = scalar_lea.vmem %s1, %s305
        %s307 = smul.u32 2, %s26
        %s308 = smul.u32 4, %s24
        %s309 = smul.u32 4, %s24
        %p310 = scmp.lt.s32.totalorder %s309, 3
        %s311 = scalar_select %p310, %s309, 3
        %s312 = scalar_lea.vmem %s3, %s311
        %s313 = smul.u32 4, %s24
        %s314 = smul.u32 4, %s24
        %p316 = scmp.eq.s32.totalorder %s26, 0
        // Predicated region
        $region41: #{tpu_custom_call.1} parent=35 // pred_check
          %p317 = pneg %p316
        $region42: #{tpu_custom_call.1} parent=35 // pred_check_branch
          %319 = sbr.rel (%p317) target = $region44
        $region43: #{tpu_custom_call.1} parent=35 // pred_region
          %v320 = vlaneseq
          %vm321 = vcmp.ge.s32.totalorder %v320, 0
          %vm322 = vcmp.lt.s32.totalorder %v320, 512
          %vm323 = vmand %vm321, %vm322
          %324 = vst.msk [vmem:[#allocation2] sm:$0xf] %vm323, -inf
        $region44: #{tpu_custom_call.1} parent=35 // pred_fallthru
          _
        %v325 = vld [vmem:[%s296] sm:$0xf]
        %v326 = vld [vmem:[%s296 + $0x4] sm:$0xf]
        %v327 = vld [vmem:[#allocation3] sm:$0xff]
        %v328 = vld [vmem:[#allocation3 + $0x8] sm:$0xff]
        %v329 = vld [vmem:[#allocation3 + $0x10] sm:$0xff]
        %v330 = vld [vmem:[#allocation3 + $0x18] sm:$0xff]
        %v331 = vld [vmem:[#allocation3 + $0x20] sm:$0xff]
        %v332 = vld [vmem:[#allocation3 + $0x28] sm:$0xff]
        %v333 = vld [vmem:[#allocation3 + $0x30] sm:$0xff]
        %v334 = vld [vmem:[#allocation3 + $0x38] sm:$0xff]
        %v337 = vunpack.c.l.b16 %v325
        %v338 = vunpack.c.l.b16 %v326
        %v339 = vpack.c.b16 %v338, %v337
        %v348 = vunpack.c.l.b16 %v327
        %v349 = vunpack.c.h.b16 %v327
        %v350 = vunpack.c.l.b16 %v328
        %v351 = vunpack.c.h.b16 %v328
        %v352 = vunpack.c.l.b16 %v329
        %v353 = vunpack.c.h.b16 %v329
        %v354 = vunpack.c.l.b16 %v330
        %v355 = vunpack.c.h.b16 %v330
        %v356 = vunpack.c.l.b16 %v331
        %v357 = vunpack.c.h.b16 %v331
        %v358 = vunpack.c.l.b16 %v332
        %v359 = vunpack.c.h.b16 %v332
        %v360 = vunpack.c.l.b16 %v333
        %v361 = vunpack.c.h.b16 %v333
        %v362 = vunpack.c.l.b16 %v334
        %v363 = vunpack.c.h.b16 %v334
        %v364 = vpack.c.b16 %v352, %v348
        %v365 = vpack.c.b16 %v353, %v349
        %v366 = vpack.c.b16 %v354, %v350
        %v367 = vpack.c.b16 %v355, %v351
        %v368 = vpack.c.b16 %v360, %v356
        %v369 = vpack.c.b16 %v361, %v357
        %v370 = vpack.c.b16 %v362, %v358
        %v371 = vpack.c.b16 %v363, %v359
        %vm380 = vcmask 261120
        %v382 = vsel %vm380, %v339, 0
        %384 = vmatpush.bf16.msra.mxu0 0
        %385 = vmatpush.bf16.msra.mxu0 0
        %386 = vmatpush.bf16.msra.mxu0 0
        %387 = vmatpush.bf16.msra.mxu0 0
        %388 = vmatpush.bf16.msra.mxu0 0
        %389 = vmatpush.bf16.msra.mxu0 0
        %390 = vmatpush.bf16.msra.mxu0 %v368
        %391 = vmatpush.bf16.msra.mxu0 %v364
        %392 = vmatmul.bf16.gmra.mxu0 %v382
        %v393 = vpop.f32.mrf.mxu0
        %v394 = vadd.f32 0.0, %v393
        %v395 = vpop.f32.mrf.mxu0
        %v396 = vadd.f32 0.0, %v395
        %397 = vdwg.mxu0
        %398 = vmatpush.bf16.msra.mxu0 0
        %399 = vmatpush.bf16.msra.mxu0 0
        %400 = vmatpush.bf16.msra.mxu0 0
        %401 = vmatpush.bf16.msra.mxu0 0
        %402 = vmatpush.bf16.msra.mxu0 0
        %403 = vmatpush.bf16.msra.mxu0 0
        %404 = vmatpush.bf16.msra.mxu0 %v369
        %405 = vmatpush.bf16.msra.mxu0 %v365
        %406 = vmatmul.bf16.gmra.mxu0 %v382
        %v407 = vpop.f32.mrf.mxu0
        %v408 = vadd.f32 0.0, %v407
        %v409 = vpop.f32.mrf.mxu0
        %v410 = vadd.f32 0.0, %v409
        %411 = vdwg.mxu0
        %412 = vmatpush.bf16.msra.mxu0 0
        %413 = vmatpush.bf16.msra.mxu0 0
        %414 = vmatpush.bf16.msra.mxu0 0
        %415 = vmatpush.bf16.msra.mxu0 0
        %416 = vmatpush.bf16.msra.mxu0 0
        %417 = vmatpush.bf16.msra.mxu0 0
        %418 = vmatpush.bf16.msra.mxu0 %v370
        %419 = vmatpush.bf16.msra.mxu0 %v366
        %420 = vmatmul.bf16.gmra.mxu0 %v382
        %v421 = vpop.f32.mrf.mxu0
        %v422 = vadd.f32 0.0, %v421
        %v423 = vpop.f32.mrf.mxu0
        %v424 = vadd.f32 0.0, %v423
        %425 = vdwg.mxu0
        %426 = vmatpush.bf16.msra.mxu0 0
        %427 = vmatpush.bf16.msra.mxu0 0
        %428 = vmatpush.bf16.msra.mxu0 0
        %429 = vmatpush.bf16.msra.mxu0 0
        %430 = vmatpush.bf16.msra.mxu0 0
        %431 = vmatpush.bf16.msra.mxu0 0
        %432 = vmatpush.bf16.msra.mxu0 %v371
        %433 = vmatpush.bf16.msra.mxu0 %v367
        %434 = vmatmul.bf16.gmra.mxu0 %v382
        %v435 = vpop.f32.mrf.mxu0
        %v436 = vadd.f32 0.0, %v435
        %v437 = vpop.f32.mrf.mxu0
        %v438 = vadd.f32 0.0, %v437
        %439 = vdwg.mxu0
        %v440 = vld [vmem:[%s306] sm:$0xff]
        %v441 = vld [vmem:[%s306 + $0x8] sm:$0xff]
        %vm442 = vcmp.gt.f32.partialorder %v440, 0.0
        %vm443 = vcmp.gt.f32.partialorder %v441, 0.0
        %v444 = vsel %vm442, 1, 0
        %v445 = vsel %vm443, 1, 0
        %446 = vset.pattern.permute.xlu0 0
        %447 = vperm.xlu0 %446, %v444
        %v448 = vpop.permute.xlu0 %447
        %449 = vset.pattern.permute.xlu0 0
        %450 = vperm.xlu0 %449, %v445
        %v451 = vpop.permute.xlu0 %450
        %vm452 = vcmp.eq.s32.totalorder %v448, 1
        %vm453 = vcmp.eq.s32.totalorder %v451, 1
        %v454 = vsel %vm452, %v394, -inf
        %v455 = vsel %vm452, %v408, -inf
        %v456 = vsel %vm452, %v422, -inf
        %v457 = vsel %vm452, %v436, -inf
        %v458 = vsel %vm453, %v396, -inf
        %v459 = vsel %vm453, %v410, -inf
        %v460 = vsel %vm453, %v424, -inf
        %v461 = vsel %vm453, %v438, -inf
        %v462 = vld [vmem:[#allocation2] sm:$0xf]
        %v463 = vmax.f32 %v454, %v458
        %v464 = vrot.slane %v463, 4
        %v465 = vmax.f32 %v463, %v464
        %v466 = vrot.slane %v465, 2
        %v467 = vmax.f32 %v465, %v466
        %v468 = vrot.slane %v467, 1
        %v469 = vmax.f32 %v467, %v468
        %v470 = vmax.f32 %v455, %v459
        %v471 = vrot.slane %v470, 4
        %v472 = vmax.f32 %v470, %v471
        %v473 = vrot.slane %v472, 2
        %v474 = vmax.f32 %v472, %v473
        %v475 = vrot.slane %v474, 1
        %v476 = vmax.f32 %v474, %v475
        %v477 = vmax.f32 %v456, %v460
        %v478 = vrot.slane %v477, 4
        %v479 = vmax.f32 %v477, %v478
        %v480 = vrot.slane %v479, 2
        %v481 = vmax.f32 %v479, %v480
        %v482 = vrot.slane %v481, 1
        %v483 = vmax.f32 %v481, %v482
        %v484 = vmax.f32 %v457, %v461
        %v485 = vrot.slane %v484, 4
        %v486 = vmax.f32 %v484, %v485
        %v487 = vrot.slane %v486, 2
        %v488 = vmax.f32 %v486, %v487
        %v489 = vrot.slane %v488, 1
        %v490 = vmax.f32 %v488, %v489
        %v495 = vrot.slane %v476, 7
        %v496 = vrot.slane %v483, 6
        %v497 = vrot.slane %v490, 5
        %vm498 = vcmask 1040384
        %v499 = vsel %vm498, %v469, %v495
        %vm500 = vcmask 1042434
        %v501 = vsel %vm500, %v496, %v497
        %vm502 = vcmask 1041408
        %v503 = vsel %vm502, %v499, %v501
        %v505 = vmax.f32 %v462, %v503
        %v506 = vlaneseq
        %vm507 = vcmp.ge.s32.totalorder %v506, 0
        %vm508 = vcmp.lt.s32.totalorder %v506, 512
        %vm509 = vmand %vm507, %vm508
        %510 = vst.msk [vmem:[#allocation2] sm:$0xf] %vm509, %v505
        // Predicated region
        $region45: #{tpu_custom_call.1} parent=35 // pred_check
          %p511 = pneg %p316
        $region46: #{tpu_custom_call.1} parent=35 // pred_check_branch
          %513 = sbr.rel (%p511) target = $region48
        $region47: #{tpu_custom_call.1} parent=35 // pred_region
          %v514 = vld [vmem:[#allocation2] sm:$0xf]
          %v515 = vld [vmem:[%s312] sm:$0xf]
          %v516 = vadd.f32 %v514, %v515
          %v517 = vmax.f32 %v516, 0.0
          %v518 = vadd.f32 %v517, 1.0
          %v519 = vlog2.pop %v518
          %v520 = vmul.f32 %v519, 0.6931472
          %v521 = vmul.f32 -0.5, %v517
          %v522 = vadd.f32 %v521, 1.0
          %v523 = vmul.f32 %v522, %v517
          %v524 = vand.u32 2147483647, %v517
          %vm525 = vcmp.lt.f32.partialorder %v524, 0.0004427343
          %v526 = vsel %vm525, %v523, %v520
          %527 = vst.msk [vmem:[%s287] sm:$0xf] %vm509, %v526
        $region48: #{tpu_custom_call.1} parent=35 // pred_fallthru
          _
        %s528 = sand.u32 %s156, 1
        %s529 = scalar_lea.sflag [#allocation5], %s528
        %s530 = sand.u32 %s156, 1
        %s531 = smul.addr %s530, 4
        %s532 = scalar_lea.vmem [#allocation6], %s531
        // Predicated region
        $region49: #{tpu_custom_call.1} parent=35 // pred_check
          %p533 = pneg %p166
        $region50: #{tpu_custom_call.1} parent=35 // pred_check_branch
          %535 = sbr.rel (%p533) target = $region52
        $region51: #{tpu_custom_call.1} parent=35 // pred_region
          %s536 = smul.u32 4, %s24
          %538 = vsyncadd %s529, 0
          %s539 = smul.addr %s25, 4
          %s540 = sadd.s32 %s536, %s539
          %s541 = scalar_lea.hbm %s4, %s540
          %s543 = sshll.u32 %s532, 4
          %s544 = int_to_ptr.vmem [resolvable:$true] %s543
          %s545 = sshll.u32 %s541, 4
          %s546 = int_to_ptr.hbm [resolvable:$true] %s545
          %548 = dma.vmem_to_hbm [thread:$0]  %s544, 64, %s546, %s529
        $region52: #{tpu_custom_call.1} parent=35 // pred_fallthru
          _
      $region36: #{tpu_custom_call.1} parent=5 // pred_fallthru
        _
      %p549 = scmp.le.s32.totalorder 2, %s14
      // Predicated region
      $region53: #{tpu_custom_call.1} parent=5 // pred_check
        %p550 = pneg %p549
      $region54: #{tpu_custom_call.1} parent=5 // pred_check_branch
        %552 = sbr.rel (%p550) target = $region56
      $region55: #{tpu_custom_call.1} parent=5 // pred_region
        %s553 = ssub.s32 %s14, 2
        // Predicated region
        $region57: #{tpu_custom_call.1} parent=55 // pred_check
          %p554 = pneg %p172
        $region58: #{tpu_custom_call.1} parent=55 // pred_check_branch
          %556 = sbr.rel (%p554) target = $region60
        $region59: #{tpu_custom_call.1} parent=55 // pred_region
          %s557 = sand.u32 %s157, 1
          %s558 = scalar_lea.sflag [#allocation5], %s557
          %s559 = sand.u32 %s157, 1
          %s560 = smul.addr %s559, 4
          %s561 = scalar_lea.vmem [#allocation6], %s560
          %563 = dma.done %s558, 64
        $region60: #{tpu_custom_call.1} parent=55 // pred_fallthru
          _
      $region56: #{tpu_custom_call.1} parent=5 // pred_fallthru
        _
    $region6: #{tpu_custom_call.1} parent=1 // loop_footer
      %s18 = sadd.s32 1, %s14
    $region7: #{tpu_custom_call.1} parent=1 // loop_footer_branch
      %13 = sbr.rel target = $region3
    $region8: #{tpu_custom_call.1} parent=1 // loop_exit
      _
    %564 = vsyncpa [#allocation4], 1
    %s565 = scalar_lea.sflag [#allocation4], 1
    %566 = vsyncpa %s565, 1
    %567 = vsyncpa [#allocation5], 1
    %s568 = scalar_lea.sflag [#allocation5], 1
    %569 = vsyncpa %s568, 1

</llo_original>
